<compile_context>
chip_gen: v6e
topology: v6e:2x2x1
jax: 0.10.0
libtpu: 0.0.40
codegen_flags: <defaults>
</compile_context>

<pallas_src>
import functools

import jax
import jax.numpy as jnp
from jax.experimental import pallas as pl
from jax.experimental.pallas import tpu as pltpu

_LANE = 128
_VMEM_LIMIT_BYTES = 32 * 1024 * 1024          # explicit scoped-VMEM limit (safe on v5e/v6e/v7x)
_VMEM_TILE_BUDGET = int(0.7 * _VMEM_LIMIT_BYTES)


def _round_up(x, m):
    return (x + m - 1) // m * m


def _pick_row_tile(n):
    """Output-row tile.  Split rows only when N is large enough to be
    compute-bound (so the extra RHS re-reads are hidden under MXU work); this
    is where v7x's second TensorCore pays off.  Small N stays single-block."""
    if n >= 1024:
        for tr in (512, 256, 128):
            if n % tr == 0:
                return tr
    return n


def _pick_reduction_tile(m_pad, per_tm_bytes, fixed_bytes):
    """Largest lane-aligned reduction tile that fits the VMEM budget."""
    for t in (8192, 4096, 2048, 1024, 512, 256, 128):
        if m_pad % t == 0 and fixed_bytes + t * per_tm_bytes <= _VMEM_TILE_BUDGET:
            return t
    return _LANE  # m_pad is always a multiple of 128 after padding


def _prepare_features(x, cast_dtype):
    """x:(B,C,H,W) -> lane-dense (N, M_pad) with M zero-padded to 128 lanes."""
    b, c, h, w = x.shape
    n, m = b * c, h * w
    feats = x.reshape(n, m)
    if cast_dtype is not None:
        feats = feats.astype(cast_dtype)
    m_pad = _round_up(m, _LANE)
    if m_pad != m:
        feats = jnp.pad(feats, ((0, 0), (0, m_pad - m)))
    return feats, n, m, m_pad


# --------------------------------------------------------------------------
# Shared in-kernel pieces
# --------------------------------------------------------------------------
def _gram_accum(lhs, rhs, acc_ref, k):
    """acc += lhs @ rhs.T in native dtype, f32 accumulation on the MXU."""
    @pl.when(k == 0)
    def _():
        acc_ref[...] = jnp.zeros_like(acc_ref)

    acc_ref[...] += jax.lax.dot_general(
        lhs, rhs, (((1,), (1,)), ((), ())), preferred_element_type=jnp.float32
    )


def _finalize_loss(w_ref, tgt_ref, loss_ref, acc_ref, inv_norm, inv_nn):
    g = acc_ref[...] * inv_norm
    d = g - tgt_ref[...].astype(jnp.float32)
    partial = jnp.sum(d * d) * (inv_nn * w_ref[0])
    loss_ref[...] = jnp.broadcast_to(partial, loss_ref.shape).astype(loss_ref.dtype)


# --------------------------------------------------------------------------
# Gram matrix kernels (used to build the "detached" target_gram)
# --------------------------------------------------------------------------
def _gram_kernel_single(f_ref, g_ref, acc_ref, *, inv_norm):
    k = pl.program_id(0)
    f = f_ref[...]
    _gram_accum(f, f, acc_ref, k)

    @pl.when(k == pl.num_programs(0) - 1)
    def _():
        g_ref[...] = (acc_ref[...] * inv_norm).astype(g_ref.dtype)


def _gram_kernel_split(fr_ref, f_ref, g_ref, acc_ref, *, inv_norm):
    k = pl.program_id(1)
    _gram_accum(fr_ref[...], f_ref[...], acc_ref, k)

    @pl.when(k == pl.num_programs(1) - 1)
    def _():
        g_ref[...] = (acc_ref[...] * inv_norm).astype(g_ref.dtype)


def gram_matrix(x, *, cast_dtype=None):
    """G = F @ F.T / (B*C*H*W) with F = x.reshape(B*C, H*W). Returns (N, N) f32."""
    feats, n, m, m_pad = _prepare_features(x, cast_dtype)
    dbytes = feats.dtype.itemsize
    tr = _pick_row_tile(n)
    n_rb = n // tr
    inv_norm = 1.0 / float(n * m)
    reads = 1 if n_rb == 1 else 1 + n_rb
    cost = pl.CostEstimate(
        flops=2 * n * n * m_pad,
        transcendentals=0,
        bytes_accessed=reads * n * m_pad * dbytes + n * n * 4,
    )
    cparams = pltpu.CompilerParams(
        dimension_semantics=("arbitrary",) if n_rb == 1 else ("parallel", "arbitrary"),
        vmem_limit_bytes=_VMEM_LIMIT_BYTES,
    )

    if n_rb == 1:
        fixed = 2 * n * n * 4 + n * n * 4                       # out bufs + acc
        tm = _pick_reduction_tile(m_pad, 2 * n * dbytes, fixed)
        return pl.pallas_call(
            functools.partial(_gram_kernel_single, inv_norm=inv_norm),
            out_shape=jax.ShapeDtypeStruct((n, n), jnp.float32),
            grid_spec=pltpu.PrefetchScalarGridSpec(
                num_scalar_prefetch=0,
                grid=(m_pad // tm,),
                in_specs=[pl.BlockSpec((n, tm), lambda k: (0, k))],
                out_specs=pl.BlockSpec((n, n), lambda k: (0, 0)),
                scratch_shapes=[pltpu.VMEM((n, n), jnp.float32)],
            ),
            compiler_params=cparams,
            cost_estimate=cost,
        )(feats)

    fixed = 2 * tr * n * 4 + tr * n * 4                         # out bufs + acc
    tm = _pick_reduction_tile(m_pad, 2 * (tr + n) * dbytes, fixed)
    return pl.pallas_call(
        functools.partial(_gram_kernel_split, inv_norm=inv_norm),
        out_shape=jax.ShapeDtypeStruct((n, n), jnp.float32),
        grid_spec=pltpu.PrefetchScalarGridSpec(
            num_scalar_prefetch=0,
            grid=(n_rb, m_pad // tm),
            in_specs=[
                pl.BlockSpec((tr, tm), lambda i, k: (i, k)),    # row block of F
                pl.BlockSpec((n, tm), lambda i, k: (0, k)),     # full F slab (rhs)
            ],
            out_specs=pl.BlockSpec((tr, n), lambda i, k: (i, 0)),
            scratch_shapes=[pltpu.VMEM((tr, n), jnp.float32)],
        ),
        compiler_params=cparams,
        cost_estimate=cost,
    )(feats, feats)


# --------------------------------------------------------------------------
# Fused StyleLoss forward: gram(inp) + weighted MSE vs target_gram
# --------------------------------------------------------------------------
def _style_loss_kernel_single(w_ref, f_ref, tgt_ref, loss_ref, acc_ref,
                              *, inv_norm, inv_nn):
    k = pl.program_id(0)
    f = f_ref[...]
    _gram_accum(f, f, acc_ref, k)

    @pl.when(k == pl.num_programs(0) - 1)
    def _():
        _finalize_loss(w_ref, tgt_ref, loss_ref, acc_ref, inv_norm, inv_nn)


def _style_loss_kernel_split(w_ref, fr_ref, f_ref, tgt_ref, loss_ref, acc_ref,
                             *, inv_norm, inv_nn):
    k = pl.program_id(1)
    _gram_accum(fr_ref[...], f_ref[...], acc_ref, k)

    @pl.when(k == pl.num_programs(1) - 1)
    def _():
        _finalize_loss(w_ref, tgt_ref, loss_ref, acc_ref, inv_norm, inv_nn)


def style_loss_forward(inp, target_gram, style_weight, *, cast_dtype=None):
    """Returns scalar loss = mse(gram(inp), target_gram) * style_weight."""
    feats, n, m, m_pad = _prepare_features(inp, cast_dtype)
    dbytes = feats.dtype.itemsize
    tr = _pick_row_tile(n)
    n_rb = n // tr
    inv_norm = 1.0 / float(n * m)
    inv_nn = 1.0 / float(n * n)
    w = jnp.asarray([style_weight], dtype=jnp.float32)           # SMEM scalar, no recompile
    reads = 1 if n_rb == 1 else 1 + n_rb
    cost = pl.CostEstimate(
        flops=2 * n * n * m_pad,
        transcendentals=0,
        bytes_accessed=reads * n * m_pad * dbytes + n * n * 4,
    )
    cparams = pltpu.CompilerParams(
        dimension_semantics=("arbitrary",) if n_rb == 1 else ("parallel", "arbitrary"),
        vmem_limit_bytes=_VMEM_LIMIT_BYTES,
    )

    if n_rb == 1:
        fixed = 2 * n * n * 4 + n * n * 4 + 2 * 8 * 128 * 4      # target bufs + acc + loss out
        tm = _pick_reduction_tile(m_pad, 2 * n * dbytes, fixed)
        partials = pl.pallas_call(
            functools.partial(_style_loss_kernel_single, inv_norm=inv_norm, inv_nn=inv_nn),
            out_shape=jax.ShapeDtypeStruct((8, 128), jnp.float32),
            grid_spec=pltpu.PrefetchScalarGridSpec(
                num_scalar_prefetch=0,
                grid=(m_pad // tm,),
                in_specs=[
                    pl.BlockSpec(memory_space=pltpu.MemorySpace.SMEM),   # style_weight
                    pl.BlockSpec((n, tm), lambda k: (0, k)),             # features
                    pl.BlockSpec((n, n), lambda k: (0, 0)),              # target gram (resident)
                ],
                out_specs=pl.BlockSpec((8, 128), lambda k: (0, 0)),
                scratch_shapes=[pltpu.VMEM((n, n), jnp.float32)],
            ),
            compiler_params=cparams,
            cost_estimate=cost,
        )(w, feats, target_gram)
        return partials[0, 0]

    fixed = 2 * tr * n * 4 + tr * n * 4 + 2 * 8 * 128 * 4
    tm = _pick_reduction_tile(m_pad, 2 * (tr + n) * dbytes, fixed)
    partials = pl.pallas_call(
        functools.partial(_style_loss_kernel_split, inv_norm=inv_norm, inv_nn=inv_nn),
        out_shape=jax.ShapeDtypeStruct((n_rb * 8, 128), jnp.float32),
        grid_spec=pltpu.PrefetchScalarGridSpec(
            num_scalar_prefetch=0,
            grid=(n_rb, m_pad // tm),
            in_specs=[
                pl.BlockSpec(memory_space=pltpu.MemorySpace.SMEM),       # style_weight
                pl.BlockSpec((tr, tm), lambda i, k: (i, k)),             # row block of F
                pl.BlockSpec((n, tm), lambda i, k: (0, k)),              # full F slab (rhs)
                pl.BlockSpec((tr, n), lambda i, k: (i, 0)),              # target gram rows
            ],
            out_specs=pl.BlockSpec((8, 128), lambda i, k: (i, 0)),       # per-row-block scalar tile
            scratch_shapes=[pltpu.VMEM((tr, n), jnp.float32)],
        ),
        compiler_params=cparams,
        cost_estimate=cost,
    )(w, feats, feats, target_gram)
    # Each row block wrote its partial loss broadcast into an (8,128) tile.
    return jnp.sum(partials.reshape(n_rb, 8, 128)[:, 0, 0])


class StyleLoss:
    """Functional mirror of the PyTorch StyleLoss module (forward only)."""

    def __init__(self, target, style_weight, *, matmul_dtype=None):
        self.matmul_dtype = matmul_dtype                  # e.g. jnp.bfloat16 for faster MXU
        self.target_gram = gram_matrix(target, cast_dtype=matmul_dtype)  # "detached" constant
        self.style_weight = float(style_weight)
        self.loss = None

    def __call__(self, inp):
        self.loss = style_loss_forward(
            inp, self.target_gram, self.style_weight, cast_dtype=self.matmul_dtype
        )
        return inp  # pass-through, as in the PyTorch module
        # TODO(synk): backward/autograd through the loss is out of scope here.


if __name__ == "__main__":
    key = jax.random.PRNGKey(0)
    k1, k2, k3, k4 = jax.random.split(key, 4)

    def ref_gram(x):
        b, c, h, w = x.shape
        f = x.reshape(b * c, h * w)
        return jnp.dot(f, f.T, precision=jax.lax.Precision.HIGHEST) / (b * c * h * w)

    # ---- Test 1: small lane-aligned shape, single-row-block path ----
    B, C, H, W = 2, 4, 16, 16
    target = jax.random.uniform(k1, (B, C, H, W), dtype=jnp.float32)
    inp = jax.random.uniform(k2, (B, C, H, W), dtype=jnp.float32)
    style_weight = 1000.0

    module = StyleLoss(target, style_weight)
    out = jax.block_until_ready(module(inp))
    loss = jax.block_until_ready(module.loss)

    T_ref = ref_gram(target)
    G_ref = ref_gram(inp)
    loss_ref = jnp.mean((G_ref - T_ref) ** 2) * style_weight

    assert out.shape == inp.shape and out.dtype == inp.dtype
    assert jnp.allclose(out, inp)
    assert jnp.allclose(module.target_gram, T_ref, atol=1e-5, rtol=1e-3)
    assert jnp.allclose(loss, loss_ref, rtol=2e-3, atol=1e-8)

    # ---- Test 2: large N (parallel row-split path) + non-128-multiple H*W (pad path) ----
    B2, C2, H2, W2 = 2, 512, 14, 14
    target2 = jax.random.uniform(k3, (B2, C2, H2, W2), dtype=jnp.float32)
    inp2 = jax.random.uniform(k4, (B2, C2, H2, W2), dtype=jnp.float32)
    module2 = StyleLoss(target2, 500.0)
    out2 = jax.block_until_ready(module2(inp2))
    loss2 = jax.block_until_ready(module2.loss)

    T2_ref = ref_gram(target2)
    G2_ref = ref_gram(inp2)
    loss2_ref = jnp.mean((G2_ref - T2_ref) ** 2) * 500.0

    assert jnp.allclose(out2, inp2)
    assert jnp.allclose(module2.target_gram, T2_ref, rtol=1e-3, atol=1e-6)
    assert jnp.allclose(loss2, loss2_ref, rtol=2e-3, atol=1e-10)

    print("KERNEL_OK")
</pallas_src>

<mosaic_0001>
module attributes {stable_mosaic.version = 11 : i64} {
  func.func @_gram_kernel_single(%arg0: i32, %arg1: memref<8x256xf32, #tpu.memory_space<vmem>>, %arg2: memref<8x8xf32, #tpu.memory_space<vmem>>, %arg3: memref<8x8xf32, #tpu.memory_space<vmem>>) attributes {dimension_semantics = [#tpu.dimension_semantics<arbitrary>], iteration_bounds = array<i64: 1>, scalar_prefetch = 0 : i64, scratch_operands = 1 : i64, tpu.core_type = #tpu.core_type<tc>, window_params = [{transform_indices = @transform_0, window_bounds = array<i64: 8, 256>}, {pipeline_mode = #tpu.pipeline_mode<synchronous>, transform_indices = @transform_1, window_bounds = array<i64: 8, 8>}]} {
    %c0 = arith.constant 0 : index
    %c0_0 = arith.constant 0 : index
    %0 = vector.load %arg1[%c0, %c0_0] : memref<8x256xf32, #tpu.memory_space<vmem>>, vector<8x256xf32>
    %c0_i32 = arith.constant 0 : i32
    %1 = arith.cmpi eq, %arg0, %c0_i32 : i32
    %2 = arith.extui %1 : i1 to i32
    %c0_i32_1 = arith.constant 0 : i32
    %3 = arith.cmpi ne, %2, %c0_i32_1 : i32
    scf.if %3 {
      %cst_8 = arith.constant 0.000000e+00 : f32
      %11 = vector.broadcast %cst_8 : f32 to vector<8x8xf32>
      %c0_9 = arith.constant 0 : index
      %c0_10 = arith.constant 0 : index
      %12 = vector.load %arg3[%c0_9, %c0_10] : memref<8x8xf32, #tpu.memory_space<vmem>>, vector<8x8xf32>
      tpu.vector_store %arg3[%c0_9, %c0_10], %11 {strides = array<i32>} : memref<8x8xf32, #tpu.memory_space<vmem>>, vector<8x8xf32>,
    } else {
    }
    %c0_2 = arith.constant 0 : index
    %c0_3 = arith.constant 0 : index
    %4 = vector.load %arg3[%c0_2, %c0_3] : memref<8x8xf32, #tpu.memory_space<vmem>>, vector<8x8xf32>
    %cst = arith.constant dense<0.000000e+00> : vector<8x8xf32>
    %5 = tpu.matmul %0, %0, %cst {dimension_numbers = #tpu.dot_dimension_numbers<[1], [1], [0], [0], [0, 0, 1, 0], [], []>} : vector<8x256xf32>, vector<8x256xf32>, vector<8x8xf32> -> vector<8x8xf32>
    %6 = arith.addf %4, %5 : vector<8x8xf32>
    %c0_4 = arith.constant 0 : index
    %c0_5 = arith.constant 0 : index
    %7 = vector.load %arg3[%c0_4, %c0_5] : memref<8x8xf32, #tpu.memory_space<vmem>>, vector<8x8xf32>
    tpu.vector_store %arg3[%c0_4, %c0_5], %6 {strides = array<i32>} : memref<8x8xf32, #tpu.memory_space<vmem>>, vector<8x8xf32>,
    %c0_i32_6 = arith.constant 0 : i32
    %8 = arith.cmpi eq, %arg0, %c0_i32_6 : i32
    %9 = arith.extui %8 : i1 to i32
    %c0_i32_7 = arith.constant 0 : i32
    %10 = arith.cmpi ne, %9, %c0_i32_7 : i32
    scf.if %10 {
      %c0_8 = arith.constant 0 : index
      %c0_9 = arith.constant 0 : index
      %11 = vector.load %arg3[%c0_8, %c0_9] : memref<8x8xf32, #tpu.memory_space<vmem>>, vector<8x8xf32>
      %cst_10 = arith.constant 4.8828125E-4 : f32
      %12 = vector.broadcast %cst_10 : f32 to vector<8x8xf32>
      %13 = arith.mulf %11, %12 : vector<8x8xf32>
      %c0_11 = arith.constant 0 : index
      %c0_12 = arith.constant 0 : index
      %14 = vector.load %arg2[%c0_11, %c0_12] : memref<8x8xf32, #tpu.memory_space<vmem>>, vector<8x8xf32>
      tpu.vector_store %arg2[%c0_11, %c0_12], %13 {strides = array<i32>} : memref<8x8xf32, #tpu.memory_space<vmem>>, vector<8x8xf32>,
    } else {
    }
    return
  }
  func.func @transform_0(%arg0: i32) -> (i32, i32) {
    %c0_i32 = arith.constant 0 : i32
    %c0_i32_0 = arith.constant 0 : i32
    return %c0_i32, %arg0 : i32, i32
  }
  func.func @transform_1(%arg0: i32) -> (i32, i32) {
    %c0_i32 = arith.constant 0 : i32
    %c0_i32_0 = arith.constant 0 : i32
    %c0_i32_1 = arith.constant 0 : i32
    return %c0_i32, %c0_i32_0 : i32, i32
  }
}

</mosaic_0001>

<llo_original>
// kernel: tpu_custom_call.1
$region0: #{tpu_custom_call.1}
  #allocation0 [shape = 'u32[]', space=smem, size = 0x4, offset = 0x4, fixed_abs, tag = 'smem constant byte address 0x4 - core index']
  #allocation1 [shape = 'u32[144,128]{1,0:T(1,128)}', space=vmem, size = 0x12000, scoped, tag = 'internal scratch']
  #allocation2 [shape = 'f32[8,8]{1,0:T(8,128)}', space=vmem, size = 0x1000, scoped, tag = 'scratch operand']
  %s0 = inlined_call_operand.hbm [shape: f32[8,256], index: 0, kind: input, shape index: {}]
  %s1 = inlined_call_operand.hbm [shape: f32[8,8], index: 1, kind: output, shape index: {}]
  %s2 = sld [smem:[#allocation0]]
  $region26: #{tpu_custom_call.1} parent=0
    _
  %s4 = ssub.s32 1, %s2
  %s5 = scalar_select 0, %s4, %s2
  $region1: #{tpu_custom_call.1} parent=0
    #allocation3 [shape = 'u8[8192]{0}', space=vmem, size = 0x2000, scoped, tag = 'input window, operand 0, single buffered']
    #allocation4 [shape = 's32[1]{0}', space=sflag, size = 0x4, scoped, tag = 'scoped memory for tpu_custom_call.1']
    #allocation5 [shape = 's32[1]{0}', space=sflag, size = 0x4, scoped, tag = 'scoped memory for tpu_custom_call.1']
    #allocation6 [shape = 'u8[4096]{0}', space=vmem, size = 0x1000, scoped, tag = 'output window, operand 0, single buffered']
    %6 = vsyncpa [#allocation4], 0
    %7 = vsyncpa [#allocation5], 0
    // Predicated region
    $region2: #{tpu_custom_call.1} parent=1 // pred_check
      _
    $region3: #{tpu_custom_call.1} parent=1 // pred_check_branch
      %9 = sbr.rel (0) target = $region5
    $region4: #{tpu_custom_call.1} parent=1 // pred_region
      %s11 = ssub.s32 256, 256
      %12 = vsyncadd [#allocation4], %s11
      %s14 = sshll.u32 [#allocation3], 4
      %s15 = int_to_ptr.vmem [resolvable:$true] %s14
      %17 = dma.hbm_to_vmem [thread:$0]  %s0, 256, %s15, [#allocation4]
    $region5: #{tpu_custom_call.1} parent=1 // pred_fallthru
      _
    // Predicated region
    $region6: #{tpu_custom_call.1} parent=1 // pred_check
      _
    $region7: #{tpu_custom_call.1} parent=1 // pred_check_branch
      %19 = sbr.rel (0) target = $region9
    $region8: #{tpu_custom_call.1} parent=1 // pred_region
      %20 = dma.done [#allocation4], 256
    $region9: #{tpu_custom_call.1} parent=1 // pred_fallthru
      _
    %v21 = vld [vmem:[#allocation3] sm:$0xff]
    %v22 = vld [vmem:[#allocation3 + $0x8] sm:$0xff]
    %p23 = scmp.eq.s32.totalorder 0, 0
    // Predicated region
    $region10: #{tpu_custom_call.1} parent=1 // pred_check
      %p24 = pneg %p23
    $region11: #{tpu_custom_call.1} parent=1 // pred_check_branch
      %26 = sbr.rel (%p24) target = $region13
    $region12: #{tpu_custom_call.1} parent=1 // pred_region
      %vm27 = vcmask 64512
      %28 = vst.msk [vmem:[#allocation2] sm:$0xff] %vm27, 0.0
    $region13: #{tpu_custom_call.1} parent=1 // pred_fallthru
      _
    %v29 = vld [vmem:[#allocation2] sm:$0xff]
    %30 = vmatprep.subr.mxu0 0.0
    %31 = vmatpush1.xpose.msra.mxu0 0.0
    %32 = vmatprep.subr.mxu0 0.0
    %33 = vmatpush1.xpose.msra.mxu0 0.0
    %34 = vmatprep.subr.mxu0 0.0
    %35 = vmatpush1.xpose.msra.mxu0 0.0
    %36 = vmatprep.subr.mxu0 0.0
    %37 = vmatpush1.xpose.msra.mxu0 0.0
    %38 = vmatprep.subr.mxu0 0.0
    %39 = vmatpush1.xpose.msra.mxu0 0.0
    %40 = vmatprep.subr.mxu0 0.0
    %41 = vmatpush1.xpose.msra.mxu0 0.0
    %42 = vmatprep.subr.mxu0 0.0
    %43 = vmatpush1.xpose.msra.mxu0 0.0
    %44 = vmatprep.subr.mxu0 0.0
    %45 = vmatpush1.xpose.msra.mxu0 0.0
    %46 = vmatprep.subr.mxu0 0.0
    %47 = vmatpush1.xpose.msra.mxu0 0.0
    %48 = vmatprep.subr.mxu0 0.0
    %49 = vmatpush1.xpose.msra.mxu0 0.0
    %50 = vmatprep.subr.mxu0 0.0
    %51 = vmatpush1.xpose.msra.mxu0 0.0
    %52 = vmatprep.subr.mxu0 0.0
    %53 = vmatpush1.xpose.msra.mxu0 0.0
    %54 = vmatprep.subr.mxu0 0.0
    %55 = vmatpush1.xpose.msra.mxu0 0.0
    %56 = vmatprep.subr.mxu0 0.0
    %57 = vmatpush1.xpose.msra.mxu0 0.0
    %58 = vmatprep.subr.mxu0 0.0
    %59 = vmatpush1.xpose.msra.mxu0 0.0
    %60 = vmatprep.subr.mxu0 %v22
    %61 = vmatpush1.xpose.msra.mxu0 %v21
    %62 = vmatprep.subr.mxu0 0.0
    %63 = vmatpush2.xpose.msra.mxu0 0.0
    %64 = vmatprep.subr.mxu0 0.0
    %65 = vmatpush2.xpose.msra.mxu0 0.0
    %66 = vmatprep.subr.mxu0 0.0
    %67 = vmatpush2.xpose.msra.mxu0 0.0
    %68 = vmatprep.subr.mxu0 0.0
    %69 = vmatpush2.xpose.msra.mxu0 0.0
    %70 = vmatprep.subr.mxu0 0.0
    %71 = vmatpush2.xpose.msra.mxu0 0.0
    %72 = vmatprep.subr.mxu0 0.0
    %73 = vmatpush2.xpose.msra.mxu0 0.0
    %74 = vmatprep.subr.mxu0 0.0
    %75 = vmatpush2.xpose.msra.mxu0 0.0
    %76 = vmatprep.subr.mxu0 0.0
    %77 = vmatpush2.xpose.msra.mxu0 0.0
    %78 = vmatprep.subr.mxu0 0.0
    %79 = vmatpush2.xpose.msra.mxu0 0.0
    %80 = vmatprep.subr.mxu0 0.0
    %81 = vmatpush2.xpose.msra.mxu0 0.0
    %82 = vmatprep.subr.mxu0 0.0
    %83 = vmatpush2.xpose.msra.mxu0 0.0
    %84 = vmatprep.subr.mxu0 0.0
    %85 = vmatpush2.xpose.msra.mxu0 0.0
    %86 = vmatprep.subr.mxu0 0.0
    %87 = vmatpush2.xpose.msra.mxu0 0.0
    %88 = vmatprep.subr.mxu0 0.0
    %89 = vmatpush2.xpose.msra.mxu0 0.0
    %90 = vmatprep.subr.mxu0 0.0
    %91 = vmatpush2.xpose.msra.mxu0 0.0
    %92 = vmatprep.subr.mxu0 0.0
    %93 = vmatpush2.xpose.msra.mxu0 0.0
    %94 = vmatprep.mubr.f32.mxu0 %v22
    %95 = vmatmul.mubr.f32.gmra.mxu0 %v21
    %v96 = vpop.f32.mrf.mxu0
    %v97 = vadd.f32 0.0, %v96
    %v98 = vpop.f32.mrf.mxu0
    %99 = vdwg.mxu0
    %v100 = vadd.f32 %v29, %v97
    %vm101 = vcmask 64512
    %102 = vst.msk [vmem:[#allocation2] sm:$0xff] %vm101, %v100
    // Predicated region
    $region14: #{tpu_custom_call.1} parent=1 // pred_check
      %p103 = pneg %p23
    $region15: #{tpu_custom_call.1} parent=1 // pred_check_branch
      %105 = sbr.rel (%p103) target = $region17
    $region16: #{tpu_custom_call.1} parent=1 // pred_region
      %v106 = vld [vmem:[#allocation2] sm:$0xff]
      %v107 = vmul.f32 %v106, 0.00048828125
      %108 = vst.msk [vmem:[#allocation6] sm:$0xff] %vm101, %v107
    $region17: #{tpu_custom_call.1} parent=1 // pred_fallthru
      _
    // Predicated region
    $region18: #{tpu_custom_call.1} parent=1 // pred_check
      _
    $region19: #{tpu_custom_call.1} parent=1 // pred_check_branch
      %110 = sbr.rel (0) target = $region21
    $region20: #{tpu_custom_call.1} parent=1 // pred_region
      %s112 = ssub.s32 128, 128
      %113 = vsyncadd [#allocation5], %s112
      %s115 = sshll.u32 [#allocation6], 4
      %s116 = int_to_ptr.vmem [resolvable:$true] %s115
      %118 = dma.vmem_to_hbm [thread:$0]  %s116, 128, %s1, [#allocation5]
    $region21: #{tpu_custom_call.1} parent=1 // pred_fallthru
      _
    // Predicated region
    $region22: #{tpu_custom_call.1} parent=1 // pred_check
      _
    $region23: #{tpu_custom_call.1} parent=1 // pred_check_branch
      %120 = sbr.rel (0) target = $region25
    $region24: #{tpu_custom_call.1} parent=1 // pred_region
      %121 = dma.done [#allocation5], 128
    $region25: #{tpu_custom_call.1} parent=1 // pred_fallthru
      _
    %122 = vsyncpa [#allocation4], 1
    %123 = vsyncpa [#allocation5], 1

</llo_original>
